<compile_context>
chip_gen: v7x
topology: tpu7x:2x2x1
jax: 0.10.0
libtpu: 0.0.40
codegen_flags: <defaults>
</compile_context>

<pallas_src>
import jax
import jax.numpy as jnp
from jax.experimental import pallas as pl
from jax.experimental.pallas import tpu as pltpu

_LANE = 128
_MIN_GRID = 4              # aim for >=4 grid steps so v7x's two TCs both stream
_MAX_TILE_BYTES = 6 << 20  # per-buffer cap; in+out double-buffered ~= 4x this


def _sublane_for(dtype) -> int:
    """Minimum sublane multiple for a dtype's packed (s, 128) vreg tiling."""
    itemsize = jnp.dtype(dtype).itemsize
    if itemsize >= 4:
        return 8       # f32 / i32
    if itemsize == 2:
        return 16      # bf16 / f16 / i16
    return 32          # i8 / fp8


def _round_up(x: int, m: int) -> int:
    return ((x + m - 1) // m) * m


def _clamp_kernel(x_ref, o_ref):
    # Elementwise clamp to [0, 6] (ReLU6 semantics) on the whole tile (VPU).
    x = x_ref[...]
    lo = jnp.asarray(0, dtype=x.dtype)
    hi = jnp.asarray(6, dtype=x.dtype)
    o_ref[...] = jnp.clip(x, lo, hi)


def clamp06(
    x: jax.Array,
    *,
    tile_rows_max: int = 4096,
    min_pallas_bytes: int = 2 << 20,
    in_place: bool = False,
) -> jax.Array:
    """torch.clamp(x, min=0, max=6) via a row-tiled Pallas TPU kernel."""
    orig_shape = x.shape
    dtype = x.dtype
    n = x.size
    itemsize = jnp.dtype(dtype).itemsize

    if n == 0:
        return x

    lo = jnp.asarray(0, dtype=dtype)
    hi = jnp.asarray(6, dtype=dtype)

    # Tiny tensors: a standalone pallas_call is launch-overhead bound and XLA
    # fuses a plain clip into its neighbors for free.
    if n * itemsize < min_pallas_bytes:
        return jnp.clip(x, lo, hi)

    sub = _sublane_for(dtype)
    rows = pl.cdiv(n, _LANE)

    # Row tile: big enough to amortize the ~0.35 us per-grid-step overhead
    # (up to tile_rows_max ~= 2 MiB/buffer for f32), small enough that the
    # grid has ~_MIN_GRID steps so both v7x TensorCores get work, and a
    # multiple of the dtype's sublane packing.
    tile_r = max(sub, _round_up(pl.cdiv(rows, _MIN_GRID), sub))
    tile_r = min(tile_r, max(sub, (tile_rows_max // sub) * sub))
    # VMEM safety cap: in + out, double-buffered must stay well under scoped
    # VMEM on every generation (v5e 16 MiB default, v6e/v7x 32 MiB).
    tile_r_cap = max(sub, (_MAX_TILE_BYTES // (_LANE * itemsize)) // sub * sub)
    tile_r = min(tile_r, tile_r_cap)

    tile_bytes = tile_r * _LANE * itemsize
    vmem_limit = int(min(max(4 * tile_bytes + (2 << 20), 16 << 20), 32 << 20))

    compiler_params = pltpu.CompilerParams(
        dimension_semantics=("parallel",),
        vmem_limit_bytes=vmem_limit,
    )
    cost = pl.CostEstimate(
        flops=2 * n, transcendentals=0, bytes_accessed=2 * n * itemsize
    )
    aliases = {0: 0} if in_place else {}

    if n % _LANE == 0:
        # Fast path: lane-dense (rows, 128) slab -- pure reshape, no pad/slice.
        x2d = x.reshape(rows, _LANE)
        out2d = pl.pallas_call(
            _clamp_kernel,
            out_shape=jax.ShapeDtypeStruct((rows, _LANE), dtype),
            grid_spec=pltpu.PrefetchScalarGridSpec(
                num_scalar_prefetch=0,
                grid=(pl.cdiv(rows, tile_r),),
                in_specs=[pl.BlockSpec((tile_r, _LANE), lambda i: (i, 0))],
                out_specs=pl.BlockSpec((tile_r, _LANE), lambda i: (i, 0)),
            ),
            compiler_params=compiler_params,
            cost_estimate=cost,
            input_output_aliases=aliases,
        )(x2d)
        return out2d.reshape(orig_shape)

    # General path (n % 128 != 0): operate on the flat buffer with
    # multiple-of-128 blocks; the final ragged block relies on Pallas' masked
    # boundary read/write, so there is no wrapper-side pad + slice traffic.
    xflat = x.reshape(-1)
    if n >= _LANE:
        tile_e = min(tile_r * _LANE, (n // _LANE) * _LANE)
    else:
        tile_e = n  # sub-128 tensors: single full-extent block
    outflat = pl.pallas_call(
        _clamp_kernel,
        out_shape=jax.ShapeDtypeStruct((n,), dtype),
        grid_spec=pltpu.PrefetchScalarGridSpec(
            num_scalar_prefetch=0,
            grid=(pl.cdiv(n, tile_e),),
            in_specs=[pl.BlockSpec((tile_e,), lambda i: (i,))],
            out_specs=pl.BlockSpec((tile_e,), lambda i: (i,)),
        ),
        compiler_params=compiler_params,
        cost_estimate=cost,
        input_output_aliases=aliases,
    )(xflat)
    return outflat.reshape(orig_shape)


if __name__ == "__main__":
    key = jax.random.PRNGKey(0)
    k1, k2 = jax.random.split(key)

    # Same shape as the PyTorch module's example input: (1, 3, 48, 64), NCHW.
    x1 = jax.random.normal(k1, (1, 3, 48, 64), dtype=jnp.float32) * 4.0
    ref1 = jnp.clip(x1, 0.0, 6.0)

    # 1) Force the Pallas path at the spec shape (default would short-circuit
    #    to jnp.clip at this tiny size) -- exercises the lane-dense 2-D path.
    out1 = jax.block_until_ready(clamp06(x1, min_pallas_bytes=0))
    assert out1.shape == x1.shape and out1.dtype == x1.dtype
    assert bool(jnp.allclose(out1, ref1)), "mismatch (2-D lane-dense path)"

    # 2) Lane-ragged size (n % 128 != 0) -- exercises the 1-D masked-boundary
    #    path that replaced the pad + slice fallback.
    x2 = jax.random.normal(k2, (7, 37), dtype=jnp.float32) * 4.0
    out2 = jax.block_until_ready(clamp06(x2, min_pallas_bytes=0))
    assert bool(jnp.allclose(out2, jnp.clip(x2, 0.0, 6.0))), "mismatch (ragged path)"

    # 3) Default call: tiny input short-circuits to jnp.clip (fused by XLA).
    out3 = jax.block_until_ready(clamp06(x1))
    assert bool(jnp.allclose(out3, ref1)), "mismatch (short-circuit path)"

    print("KERNEL_OK")
</pallas_src>

<mosaic_0001>
module attributes {stable_mosaic.version = 11 : i64} {
  func.func @_clamp_kernel(%arg0: i32, %arg1: memref<24x128xf32, #tpu.memory_space<vmem>>, %arg2: memref<24x128xf32, #tpu.memory_space<vmem>>) attributes {dimension_semantics = [#tpu.dimension_semantics<parallel>], iteration_bounds = array<i64: 3>, scalar_prefetch = 0 : i64, scratch_operands = 0 : i64, tpu.core_type = #tpu.core_type<tc>, window_params = [{transform_indices = @transform_0, window_bounds = array<i64: 24, 128>}, {transform_indices = @transform_1, window_bounds = array<i64: 24, 128>}]} {
    %c0 = arith.constant 0 : index
    %c0_0 = arith.constant 0 : index
    %0 = vector.load %arg1[%c0, %c0_0] : memref<24x128xf32, #tpu.memory_space<vmem>>, vector<24x128xf32>
    %cst = arith.constant 0.000000e+00 : f32
    %cst_1 = arith.constant 6.000000e+00 : f32
    %1 = vector.broadcast %cst : f32 to vector<24x128xf32>
    %2 = arith.maximumf %1, %0 : vector<24x128xf32>
    %3 = vector.broadcast %cst_1 : f32 to vector<24x128xf32>
    %4 = arith.minimumf %3, %2 : vector<24x128xf32>
    %c0_2 = arith.constant 0 : index
    %c0_3 = arith.constant 0 : index
    %5 = vector.load %arg2[%c0_2, %c0_3] : memref<24x128xf32, #tpu.memory_space<vmem>>, vector<24x128xf32>
    tpu.vector_store %arg2[%c0_2, %c0_3], %4 {strides = array<i32>} : memref<24x128xf32, #tpu.memory_space<vmem>>, vector<24x128xf32>,
    return
  }
  func.func @transform_0(%arg0: i32) -> (i32, i32) {
    %c0_i32 = arith.constant 0 : i32
    %c0_i32_0 = arith.constant 0 : i32
    return %arg0, %c0_i32 : i32, i32
  }
  func.func @transform_1(%arg0: i32) -> (i32, i32) {
    %c0_i32 = arith.constant 0 : i32
    %c0_i32_0 = arith.constant 0 : i32
    return %arg0, %c0_i32 : i32, i32
  }
}

</mosaic_0001>

<llo_original>
// kernel: tpu_custom_call.1
$region0: #{tpu_custom_call.1}
  #allocation0 [shape = 'u32[]', space=smem, size = 0x4, offset = 0x4, fixed_abs, tag = 'smem constant byte address 0x4 - core index']
  #allocation1 [shape = 'u32[144,128]{1,0:T(1,128)}', space=vmem, size = 0x12000, scoped, tag = 'internal scratch']
  %s0 = inlined_call_operand.hbm [shape: f32[72,128], index: 0, kind: input, shape index: {}]
  %s1 = inlined_call_operand.hbm [shape: f32[72,128], index: 1, kind: output, shape index: {}]
  %s2 = sld [smem:[#allocation0]]
  $region41: #{tpu_custom_call.1} parent=0
    _
  %s4 = ssub.s32 1, %s2
  %s5 = scalar_select 0, %s4, %s2
  $region1: #{tpu_custom_call.1} parent=0
    #allocation2 [shape = 'u8[24576]{0}', space=vmem, size = 0x6000, scoped, tag = 'input window, operand 0']
    #allocation3 [shape = 's32[2]{0}', space=sflag, size = 0x8, scoped, tag = 'scoped memory for tpu_custom_call.1']
    #allocation4 [shape = 's32[2]{0}', space=sflag, size = 0x8, scoped, tag = 'scoped memory for tpu_custom_call.1']
    #allocation5 [shape = 'u8[24576]{0}', space=vmem, size = 0x6000, scoped, tag = 'output window, operand 0']
    %6 = vsyncpa [#allocation3], 0
    %s7 = scalar_lea.sflag [#allocation3], 1
    %8 = vsyncpa %s7, 0
    %9 = vsyncpa [#allocation4], 0
    %s10 = scalar_lea.sflag [#allocation4], 1
    %11 = vsyncpa %s10, 0
    loop: start=0, step=1, limit=5
    $region2: #{tpu_custom_call.1} parent=1 // loop_pre_header
      _
    $region3: #{tpu_custom_call.1} parent=1 // loop_header
      %s13 = sphi 0, %s17
      %p14 = scmp.ge.s32.totalorder %s13, 5
      %s23 = sphi 0, %s25
      %s26 = sphi 0, %s23
      %s27 = sphi 0, %s26
      %s43 = sphi 0, %s27
      %s49 = sphi 0, %s51
      %s52 = sphi 0, %s49
      %s53 = sphi 0, %s52
      %s69 = sphi 0, %s53
    $region4: #{tpu_custom_call.1} parent=1 // loop_header_branch
      %16 = sbr.rel (%p14) target = $region8
    $region5: #{tpu_custom_call.1} parent=1 // loop_body
      %s18 = ssub.s32 %s13, 1
      %s19 = ssub.s32 %s13, 2
      %s20 = sadd.s32 %s13, 1
      %s21 = ssub.s32 %s13, %s20
      %p22 = scmp.eq.s32.totalorder %s21, 0
      %s24 = sadd.s32 %s23, 1
      %s25 = scalar_select %p22, %s23, %s24
      %p28 = pneg %p22
      %p29 = scmp.eq.s32.totalorder %s13, 2
      %p30 = por %p28, %p29
      %p31 = scmp.ne.s32.totalorder %s23, %s26
      %p32 = scmp.eq.s32.totalorder %s13, 0
      %p33 = por %p31, %p32
      %p34 = scmp.ne.s32.totalorder %s23, %s26
      %p35 = scmp.eq.s32.totalorder %s18, 2
      %p36 = por %p34, %p35
      %p37 = scmp.ne.s32.totalorder %s26, %s27
      %p38 = scmp.eq.s32.totalorder %s18, 0
      %p39 = por %p37, %p38
      %p40 = scmp.ne.s32.totalorder %s26, %s27
      %p41 = scmp.eq.s32.totalorder %s19, 2
      %p42 = por %p40, %p41
      %p44 = scmp.ne.s32.totalorder %s27, %s43
      %p45 = scmp.eq.s32.totalorder %s19, 0
      %p46 = por %p44, %p45
      %s47 = ssub.s32 %s13, %s20
      %p48 = scmp.eq.s32.totalorder %s47, 0
      %s50 = sadd.s32 %s49, 1
      %s51 = scalar_select %p48, %s49, %s50
      %p54 = pneg %p48
      %p55 = scmp.eq.s32.totalorder %s13, 2
      %p56 = por %p54, %p55
      %p57 = scmp.ne.s32.totalorder %s49, %s52
      %p58 = scmp.eq.s32.totalorder %s13, 0
      %p59 = por %p57, %p58
      %p60 = scmp.ne.s32.totalorder %s49, %s52
      %p61 = scmp.eq.s32.totalorder %s18, 2
      %p62 = por %p60, %p61
      %p63 = scmp.ne.s32.totalorder %s52, %s53
      %p64 = scmp.eq.s32.totalorder %s18, 0
      %p65 = por %p63, %p64
      %p66 = scmp.ne.s32.totalorder %s52, %s53
      %p67 = scmp.eq.s32.totalorder %s19, 2
      %p68 = por %p66, %p67
      %p70 = scmp.ne.s32.totalorder %s53, %s69
      %p71 = scmp.eq.s32.totalorder %s19, 0
      %p72 = por %p70, %p71
      %p73 = scmp.le.s32.totalorder 1, %s13
      %p74 = scmp.lt.s32.totalorder %s13, 4
      %p75 = pnand %p73, %p74
      %p76 = pneg %p75
      // Predicated region
      $region9: #{tpu_custom_call.1} parent=5 // pred_check
        _
      $region10: #{tpu_custom_call.1} parent=5 // pred_check_branch
        %78 = sbr.rel (%p75) target = $region12
      $region11: #{tpu_custom_call.1} parent=5 // pred_region
        %s79 = ssub.s32 %s13, 1
      $region12: #{tpu_custom_call.1} parent=5 // pred_fallthru
        _
      %p80 = scmp.lt.s32.totalorder %s13, 3
      // Predicated region
      $region13: #{tpu_custom_call.1} parent=5 // pred_check
        %p81 = pneg %p80
      $region14: #{tpu_custom_call.1} parent=5 // pred_check_branch
        %83 = sbr.rel (%p81) target = $region16
      $region15: #{tpu_custom_call.1} parent=5 // pred_region
        // Predicated region
        $region17: #{tpu_custom_call.1} parent=15 // pred_check
          %p84 = pneg %p33
        $region18: #{tpu_custom_call.1} parent=15 // pred_check_branch
          %86 = sbr.rel (%p84) target = $region20
        $region19: #{tpu_custom_call.1} parent=15 // pred_region
          %s87 = sand.u32 %s23, 1
          %s88 = scalar_lea.sflag [#allocation3], %s87
          %s89 = sand.u32 %s23, 1
          %s90 = smul.addr %s89, 24
          %s91 = scalar_lea.vmem [#allocation2], %s90
          %s92 = smul.u32 3, %s13
          %s94 = ssub.s32 384, 384
          %95 = vsyncadd %s88, %s94
          %s96 = smul.addr %s92, 128
          %s97 = scalar_lea.hbm %s0, %s96
          %s98 = sshll.u32 %s91, 4
          %s99 = int_to_ptr.vmem [resolvable:$true] %s98
          %104 = dma.hbm_to_vmem [thread:$0]  %s97, 384, %s99, %s88, 128, 128, 8
        $region20: #{tpu_custom_call.1} parent=15 // pred_fallthru
          _
      $region16: #{tpu_custom_call.1} parent=5 // pred_fallthru
        _
      %p105 = scmp.le.s32.totalorder 1, %s13
      %p106 = scmp.lt.s32.totalorder %s13, 4
      %p107 = pnand %p105, %p106
      %p108 = pneg %p107
      // Predicated region
      $region21: #{tpu_custom_call.1} parent=5 // pred_check
        _
      $region22: #{tpu_custom_call.1} parent=5 // pred_check_branch
        %110 = sbr.rel (%p107) target = $region24
      $region23: #{tpu_custom_call.1} parent=5 // pred_region
        %s111 = ssub.s32 %s13, 1
        %s112 = sand.u32 %s26, 1
        %s113 = scalar_lea.sflag [#allocation3], %s112
        %s114 = sand.u32 %s26, 1
        %s115 = smul.addr %s114, 24
        %s116 = scalar_lea.vmem [#allocation2], %s115
        // Predicated region
        $region25: #{tpu_custom_call.1} parent=23 // pred_check
          %p117 = pneg %p39
        $region26: #{tpu_custom_call.1} parent=23 // pred_check_branch
          %119 = sbr.rel (%p117) target = $region28
        $region27: #{tpu_custom_call.1} parent=23 // pred_region
          %120 = dma.done %s113, 384
        $region28: #{tpu_custom_call.1} parent=23 // pred_fallthru
          _
        %s121 = sand.u32 %s26, 1
        %s122 = scalar_lea.sflag [#allocation3], %s121
        %s123 = sand.u32 %s26, 1
        %s124 = smul.addr %s123, 24
        %s125 = scalar_lea.vmem [#allocation2], %s124
        %p126 = pneg %p39
        %p127 = pneg %p36
        %p128 = pneg %p65
        %p129 = pneg %p62
        %s130 = sand.u32 %s52, 1
        %s131 = scalar_lea.sflag [#allocation4], %s130
        %s132 = sand.u32 %s52, 1
        %s133 = smul.addr %s132, 24
        %s134 = scalar_lea.vmem [#allocation5], %s133
        %s135 = smul.u32 3, %s18
        %s136 = smul.u32 3, %s18
        %v137 = vld [vmem:[%s116] sm:$0xff]
        %v138 = vld [vmem:[%s116 + $0x8] sm:$0xff]
        %v139 = vld [vmem:[%s116 + $0x10] sm:$0xff]
        %v140 = vmax.f32 %v137, 0.0
        %v141 = vmax.f32 %v138, 0.0
        %v142 = vmax.f32 %v139, 0.0
        %v143 = vmin.f32 %v140, 6.0
        %v144 = vmin.f32 %v141, 6.0
        %v145 = vmin.f32 %v142, 6.0
        %146 = vst [vmem:[%s134] sm:$0xff] %v143
        %147 = vst [vmem:[%s134 + $0x8] sm:$0xff] %v144
        %148 = vst [vmem:[%s134 + $0x10] sm:$0xff] %v145
        %s149 = sand.u32 %s52, 1
        %s150 = scalar_lea.sflag [#allocation4], %s149
        %s151 = sand.u32 %s52, 1
        %s152 = smul.addr %s151, 24
        %s153 = scalar_lea.vmem [#allocation5], %s152
        // Predicated region
        $region29: #{tpu_custom_call.1} parent=23 // pred_check
          %p154 = pneg %p62
        $region30: #{tpu_custom_call.1} parent=23 // pred_check_branch
          %156 = sbr.rel (%p154) target = $region32
        $region31: #{tpu_custom_call.1} parent=23 // pred_region
          %s157 = smul.u32 3, %s18
          %s159 = ssub.s32 384, 384
          %160 = vsyncadd %s150, %s159
          %s161 = smul.addr %s157, 128
          %s162 = scalar_lea.hbm %s1, %s161
          %s163 = sshll.u32 %s153, 4
          %s164 = int_to_ptr.vmem [resolvable:$true] %s163
          %169 = dma.vmem_to_hbm [thread:$0]  %s164, 384, %s162, %s150, 128, 128, 8
        $region32: #{tpu_custom_call.1} parent=23 // pred_fallthru
          _
      $region24: #{tpu_custom_call.1} parent=5 // pred_fallthru
        _
      %p170 = scmp.le.s32.totalorder 2, %s13
      // Predicated region
      $region33: #{tpu_custom_call.1} parent=5 // pred_check
        %p171 = pneg %p170
      $region34: #{tpu_custom_call.1} parent=5 // pred_check_branch
        %173 = sbr.rel (%p171) target = $region36
      $region35: #{tpu_custom_call.1} parent=5 // pred_region
        %s174 = ssub.s32 %s13, 2
        // Predicated region
        $region37: #{tpu_custom_call.1} parent=35 // pred_check
          %p175 = pneg %p68
        $region38: #{tpu_custom_call.1} parent=35 // pred_check_branch
          %177 = sbr.rel (%p175) target = $region40
        $region39: #{tpu_custom_call.1} parent=35 // pred_region
          %s178 = sand.u32 %s53, 1
          %s179 = scalar_lea.sflag [#allocation4], %s178
          %s180 = sand.u32 %s53, 1
          %s181 = smul.addr %s180, 24
          %s182 = scalar_lea.vmem [#allocation5], %s181
          %183 = dma.done %s179, 384
        $region40: #{tpu_custom_call.1} parent=35 // pred_fallthru
          _
      $region36: #{tpu_custom_call.1} parent=5 // pred_fallthru
        _
    $region6: #{tpu_custom_call.1} parent=1 // loop_footer
      %s17 = sadd.s32 1, %s13
    $region7: #{tpu_custom_call.1} parent=1 // loop_footer_branch
      %12 = sbr.rel target = $region3
    $region8: #{tpu_custom_call.1} parent=1 // loop_exit
      _
    %184 = vsyncpa [#allocation3], 1
    %s185 = scalar_lea.sflag [#allocation3], 1
    %186 = vsyncpa %s185, 1
    %187 = vsyncpa [#allocation4], 1
    %s188 = scalar_lea.sflag [#allocation4], 1
    %189 = vsyncpa %s188, 1

</llo_original>
